<compile_context>
chip_gen: v6e
topology: v6e:2x2x1
jax: 0.10.0
libtpu: 0.0.40
codegen_flags: <defaults>
</compile_context>

<pallas_src>
import jax
import jax.numpy as jnp
from jax import lax
from jax.experimental import pallas as pl
from jax.experimental.pallas import tpu as pltpu

_INV_SQRT2 = 0.7071067811865476


def _round_up(x, m):
    return ((x + m - 1) // m) * m


def _largest_divisor_tile(total, granule, max_tile):
    """Largest multiple of `granule` that divides `total` and is <= max_tile."""
    m = total // granule
    cap = max(1, max_tile // granule)
    best = 1
    for d in range(1, m + 1):
        if m % d == 0 and d <= cap:
            best = d
    return best * granule


def _ffn_kernel_direct(x_ref, w1_ref, b1_ref, w2_ref, b2_ref, o_ref):
    """f32 output: accumulate straight into the resident output tile."""
    k = pl.program_id(1)

    @pl.when(k == 0)
    def _():
        o_ref[...] = jnp.broadcast_to(b2_ref[...], o_ref.shape)

    # h_chunk = x_tile [TM, Dm] @ W1^T slice [Dm, TK]
    h = jnp.dot(x_ref[...], w1_ref[...], preferred_element_type=jnp.float32)
    h = h + b1_ref[...]
    # Exact GELU (PyTorch nn.GELU default).
    g = 0.5 * h * (1.0 + lax.erf(h * _INV_SQRT2))
    # TODO(synk): dropout is training-mode only; eval forward is identity, omitted.
    # out_tile += g_chunk [TM, TK] @ W2^T slice [TK, Dm]
    o_ref[...] += jnp.dot(g.astype(x_ref.dtype), w2_ref[...],
                          preferred_element_type=jnp.float32)


def _ffn_kernel_acc(x_ref, w1_ref, b1_ref, w2_ref, b2_ref, o_ref, acc_ref):
    """Non-f32 output: f32 scratch accumulator, cast + store at final k."""
    k = pl.program_id(1)

    @pl.when(k == 0)
    def _():
        acc_ref[...] = jnp.zeros_like(acc_ref)

    h = jnp.dot(x_ref[...], w1_ref[...], preferred_element_type=jnp.float32)
    h = h + b1_ref[...]
    g = 0.5 * h * (1.0 + lax.erf(h * _INV_SQRT2))
    acc_ref[...] += jnp.dot(g.astype(x_ref.dtype), w2_ref[...],
                            preferred_element_type=jnp.float32)

    @pl.when(k == pl.num_programs(1) - 1)
    def _():
        o_ref[...] = (acc_ref[...] + b2_ref[...]).astype(o_ref.dtype)


def feed_forward_pallas(x, w1, b1, w2, b2, *, tile_m=None, tile_k=512):
    """Eval-mode FeedForward: gelu(x @ w1.T + b1) @ w2.T + b2.

    x:  [..., d_model]
    w1: [d_ff, d_model], b1: [d_ff]     (PyTorch nn.Linear layout)
    w2: [d_model, d_ff], b2: [d_model]
    """
    *lead, d_model = x.shape
    d_ff = w1.shape[0]
    n = 1
    for s in lead:
        n *= s

    # --- Generation-aware VMEM budget (v5e/v6e: 128 MiB, v7x: 64 MiB/TC). ---
    try:
        phys_vmem = int(pltpu.get_tpu_info().vmem_capacity_bytes)
    except Exception:
        phys_vmem = 64 * 1024 * 1024          # conservative fallback (v7x per-TC)
    vmem_limit = int(phys_vmem * 0.75)        # headroom for Mosaic internal scratch

    sublane = 16 if x.dtype == jnp.bfloat16 else 8
    if tile_m is None:
        # Bigger token tiles amortize re-streaming the weights from HBM.
        tile_m = 768 if phys_vmem >= 100 * 1024 * 1024 else 512

    # --- Pad feature dims to lane granule only (no tile_k-sized padding). ---
    d_model_p = _round_up(d_model, 128)
    d_ff_p = _round_up(d_ff, 128)
    tile_k = _largest_divisor_tile(d_ff_p, 128, min(tile_k, d_ff_p))
    tile_m = _round_up(min(tile_m, _round_up(n, sublane)), sublane)

    out_dtype = x.dtype
    direct = out_dtype == jnp.float32
    in_bytes = x.dtype.itemsize
    out_bytes = jnp.dtype(out_dtype).itemsize

    # --- Shrink tiles if the double-buffered working set overflows VMEM. ---
    def vmem_bytes(tm, tk):
        b = 2 * tm * d_model_p * in_bytes          # x tiles (double-buffered)
        b += 2 * d_model_p * tk * in_bytes         # W1^T slices
        b += 2 * tk * d_model_p * in_bytes         # W2^T slices
        b += 2 * (tk + d_model_p) * in_bytes       # bias slices
        b += 2 * tm * d_model_p * out_bytes        # output tiles
        if not direct:
            b += tm * d_model_p * 4                # f32 accumulator scratch
        return b

    budget = int(0.6 * vmem_limit)
    while vmem_bytes(tile_m, tile_k) > budget and tile_k > 128:
        tile_k = _largest_divisor_tile(d_ff_p, 128, tile_k // 2)
    while vmem_bytes(tile_m, tile_k) > budget and tile_m > sublane:
        tile_m = max(sublane, _round_up(tile_m // 2, sublane))
    n_p = _round_up(n, tile_m)

    # --- Pad inputs; pre-transpose weights once (MXU-preferred [M,K]@[K,N]). --
    x2d = x.reshape(n, d_model)
    if (n_p, d_model_p) != (n, d_model):
        x2d = jnp.pad(x2d, ((0, n_p - n), (0, d_model_p - d_model)))
    w1t = jnp.pad(w1.T, ((0, d_model_p - d_model), (0, d_ff_p - d_ff)))
    w2t = jnp.pad(w2.T, ((0, d_ff_p - d_ff), (0, d_model_p - d_model)))
    b1p = jnp.pad(b1, (0, d_ff_p - d_ff)).reshape(1, d_ff_p)
    b2p = jnp.pad(b2, (0, d_model_p - d_model)).reshape(1, d_model_p)

    grid = (n_p // tile_m, d_ff_p // tile_k)

    in_specs = [
        pl.BlockSpec((tile_m, d_model_p), lambda i, k: (i, 0)),   # x tile
        pl.BlockSpec((d_model_p, tile_k), lambda i, k: (0, k)),   # W1^T slice
        pl.BlockSpec((1, tile_k), lambda i, k: (0, k)),           # b1 slice
        pl.BlockSpec((tile_k, d_model_p), lambda i, k: (k, 0)),   # W2^T slice
        pl.BlockSpec((1, d_model_p), lambda i, k: (0, 0)),        # b2
    ]
    out_spec = pl.BlockSpec((tile_m, d_model_p), lambda i, k: (i, 0))

    kernel = _ffn_kernel_direct if direct else _ffn_kernel_acc
    scratch = [] if direct else [pltpu.VMEM((tile_m, d_model_p), jnp.float32)]

    grid_spec = pltpu.PrefetchScalarGridSpec(
        num_scalar_prefetch=0,
        grid=grid,
        in_specs=in_specs,
        out_specs=out_spec,
        scratch_shapes=scratch,
    )

    cost = pl.CostEstimate(
        flops=4 * n * d_ff * d_model,
        transcendentals=n * d_ff,
        bytes_accessed=(n_p * d_model_p * (in_bytes + out_bytes)
                        + grid[0] * 2 * d_model_p * d_ff_p * in_bytes),
    )

    out2d = pl.pallas_call(
        kernel,
        out_shape=jax.ShapeDtypeStruct((n_p, d_model_p), out_dtype),
        grid_spec=grid_spec,
        compiler_params=pltpu.CompilerParams(
            # Token axis is independent (shards across TensorCores on v7x);
            # d_ff axis is a reduction into the resident output/accumulator.
            dimension_semantics=("parallel", "arbitrary"),
            vmem_limit_bytes=vmem_limit,
        ),
        cost_estimate=cost,
    )(x2d, w1t, b1p, w2t, b2p)

    return out2d[:n, :d_model].reshape(*lead, d_model)


def _reference(x, w1, b1, w2, b2):
    h = x @ w1.T + b1
    g = jax.nn.gelu(h, approximate=False)
    return g @ w2.T + b2


if __name__ == "__main__":
    # Small shapes consistent with the module: batch=2, seq=8, d_model=32, d_ff=64
    batch, seq, d_model, d_ff = 2, 8, 32, 64

    key = jax.random.PRNGKey(0)
    kx, kw1, kb1, kw2, kb2 = jax.random.split(key, 5)

    x = jax.random.normal(kx, (batch, seq, d_model), dtype=jnp.float32)
    # nn.Linear(d_model, d_ff): weight [d_ff, d_model], bias [d_ff]
    w1 = jax.random.normal(kw1, (d_ff, d_model), dtype=jnp.float32) * 0.05
    b1 = jax.random.normal(kb1, (d_ff,), dtype=jnp.float32) * 0.05
    # nn.Linear(d_ff, d_model): weight [d_model, d_ff], bias [d_model]
    w2 = jax.random.normal(kw2, (d_model, d_ff), dtype=jnp.float32) * 0.05
    b2 = jax.random.normal(kb2, (d_model,), dtype=jnp.float32) * 0.05

    out = feed_forward_pallas(x, w1, b1, w2, b2)
    out = jax.block_until_ready(out)

    ref = _reference(x, w1, b1, w2, b2)
    assert out.shape == (batch, seq, d_model)
    assert jnp.allclose(out, ref, atol=1e-4, rtol=1e-4), "mismatch vs reference"

    print("KERNEL_OK")
</pallas_src>

<mosaic_0001>
module attributes {stable_mosaic.version = 11 : i64} {
  func.func @_ffn_kernel_direct(%arg0: i32, %arg1: i32, %arg2: memref<16x128xf32, #tpu.memory_space<vmem>>, %arg3: memref<128x128xf32, #tpu.memory_space<vmem>>, %arg4: memref<1x128xf32, #tpu.memory_space<vmem>>, %arg5: memref<128x128xf32, #tpu.memory_space<vmem>>, %arg6: memref<1x128xf32, #tpu.memory_space<vmem>>, %arg7: memref<16x128xf32, #tpu.memory_space<vmem>>) attributes {dimension_semantics = [#tpu.dimension_semantics<parallel>, #tpu.dimension_semantics<arbitrary>], iteration_bounds = array<i64: 1, 1>, scalar_prefetch = 0 : i64, scratch_operands = 0 : i64, tpu.core_type = #tpu.core_type<tc>, window_params = [{transform_indices = @transform_0, window_bounds = array<i64: 16, 128>}, {transform_indices = @transform_1, window_bounds = array<i64: 128, 128>}, {transform_indices = @transform_2, window_bounds = array<i64: 1, 128>}, {transform_indices = @transform_3, window_bounds = array<i64: 128, 128>}, {pipeline_mode = #tpu.pipeline_mode<synchronous>, transform_indices = @transform_4, window_bounds = array<i64: 1, 128>}, {transform_indices = @transform_5, window_bounds = array<i64: 16, 128>}]} {
    %c0_i32 = arith.constant 0 : i32
    %0 = arith.cmpi eq, %arg1, %c0_i32 : i32
    %1 = arith.extui %0 : i1 to i32
    %c0_i32_0 = arith.constant 0 : i32
    %2 = arith.cmpi ne, %1, %c0_i32_0 : i32
    scf.if %2 {
      %c0_16 = arith.constant 0 : index
      %c0_17 = arith.constant 0 : index
      %22 = vector.load %arg6[%c0_16, %c0_17] : memref<1x128xf32, #tpu.memory_space<vmem>>, vector<1x128xf32>
      %23 = vector.shape_cast %22 : vector<1x128xf32> to vector<1x128xf32>
      %24 = vector.broadcast %23 : vector<1x128xf32> to vector<16x128xf32>
      %c0_18 = arith.constant 0 : index
      %c0_19 = arith.constant 0 : index
      %25 = vector.load %arg7[%c0_18, %c0_19] : memref<16x128xf32, #tpu.memory_space<vmem>>, vector<16x128xf32>
      tpu.vector_store %arg7[%c0_18, %c0_19], %24 {strides = array<i32>} : memref<16x128xf32, #tpu.memory_space<vmem>>, vector<16x128xf32>,
    } else {
    }
    %c0 = arith.constant 0 : index
    %c0_1 = arith.constant 0 : index
    %3 = vector.load %arg2[%c0, %c0_1] : memref<16x128xf32, #tpu.memory_space<vmem>>, vector<16x128xf32>
    %c0_2 = arith.constant 0 : index
    %c0_3 = arith.constant 0 : index
    %4 = vector.load %arg3[%c0_2, %c0_3] : memref<128x128xf32, #tpu.memory_space<vmem>>, vector<128x128xf32>
    %cst = arith.constant dense<0.000000e+00> : vector<16x128xf32>
    %5 = tpu.matmul %3, %4, %cst {dimension_numbers = #tpu.dot_dimension_numbers<[1], [0], [0], [1], [0, 0, 1, 1], [], []>} : vector<16x128xf32>, vector<128x128xf32>, vector<16x128xf32> -> vector<16x128xf32>
    %c0_4 = arith.constant 0 : index
    %c0_5 = arith.constant 0 : index
    %6 = vector.load %arg4[%c0_4, %c0_5] : memref<1x128xf32, #tpu.memory_space<vmem>>, vector<1x128xf32>
    %7 = vector.broadcast %6 : vector<1x128xf32> to vector<16x128xf32>
    %8 = arith.addf %5, %7 : vector<16x128xf32>
    %cst_6 = arith.constant 5.000000e-01 : f32
    %9 = vector.broadcast %cst_6 : f32 to vector<16x128xf32>
    %10 = arith.mulf %9, %8 : vector<16x128xf32>
    %cst_7 = arith.constant 0.707106769 : f32
    %11 = vector.broadcast %cst_7 : f32 to vector<16x128xf32>
    %12 = arith.mulf %8, %11 : vector<16x128xf32>
    %13 = math.erf %12 : vector<16x128xf32>
    %cst_8 = arith.constant 1.000000e+00 : f32
    %14 = vector.broadcast %cst_8 : f32 to vector<16x128xf32>
    %15 = arith.addf %14, %13 : vector<16x128xf32>
    %16 = arith.mulf %10, %15 : vector<16x128xf32>
    %c0_9 = arith.constant 0 : index
    %c0_10 = arith.constant 0 : index
    %17 = vector.load %arg7[%c0_9, %c0_10] : memref<16x128xf32, #tpu.memory_space<vmem>>, vector<16x128xf32>
    %c0_11 = arith.constant 0 : index
    %c0_12 = arith.constant 0 : index
    %18 = vector.load %arg5[%c0_11, %c0_12] : memref<128x128xf32, #tpu.memory_space<vmem>>, vector<128x128xf32>
    %cst_13 = arith.constant dense<0.000000e+00> : vector<16x128xf32>
    %19 = tpu.matmul %16, %18, %cst_13 {dimension_numbers = #tpu.dot_dimension_numbers<[1], [0], [0], [1], [0, 0, 1, 1], [], []>} : vector<16x128xf32>, vector<128x128xf32>, vector<16x128xf32> -> vector<16x128xf32>
    %20 = arith.addf %17, %19 : vector<16x128xf32>
    %c0_14 = arith.constant 0 : index
    %c0_15 = arith.constant 0 : index
    %21 = vector.load %arg7[%c0_14, %c0_15] : memref<16x128xf32, #tpu.memory_space<vmem>>, vector<16x128xf32>
    tpu.vector_store %arg7[%c0_14, %c0_15], %20 {strides = array<i32>} : memref<16x128xf32, #tpu.memory_space<vmem>>, vector<16x128xf32>,
    return
  }
  func.func @transform_0(%arg0: i32, %arg1: i32) -> (i32, i32) {
    %c0_i32 = arith.constant 0 : i32
    %c0_i32_0 = arith.constant 0 : i32
    return %arg0, %c0_i32 : i32, i32
  }
  func.func @transform_1(%arg0: i32, %arg1: i32) -> (i32, i32) {
    %c0_i32 = arith.constant 0 : i32
    %c0_i32_0 = arith.constant 0 : i32
    return %c0_i32, %arg1 : i32, i32
  }
  func.func @transform_2(%arg0: i32, %arg1: i32) -> (i32, i32) {
    %c0_i32 = arith.constant 0 : i32
    %c0_i32_0 = arith.constant 0 : i32
    return %c0_i32, %arg1 : i32, i32
  }
  func.func @transform_3(%arg0: i32, %arg1: i32) -> (i32, i32) {
    %c0_i32 = arith.constant 0 : i32
    %c0_i32_0 = arith.constant 0 : i32
    return %arg1, %c0_i32 : i32, i32
  }
  func.func @transform_4(%arg0: i32, %arg1: i32) -> (i32, i32) {
    %c0_i32 = arith.constant 0 : i32
    %c0_i32_0 = arith.constant 0 : i32
    %c0_i32_1 = arith.constant 0 : i32
    return %c0_i32, %c0_i32_0 : i32, i32
  }
  func.func @transform_5(%arg0: i32, %arg1: i32) -> (i32, i32) {
    %c0_i32 = arith.constant 0 : i32
    %c0_i32_0 = arith.constant 0 : i32
    return %arg0, %c0_i32 : i32, i32
  }
}

</mosaic_0001>

<llo_original>
// kernel: tpu_custom_call.1
$region0: #{tpu_custom_call.1}
  #allocation0 [shape = 'u32[]', space=smem, size = 0x4, offset = 0x4, fixed_abs, tag = 'smem constant byte address 0x4 - core index']
  #allocation1 [shape = 'u32[144,128]{1,0:T(1,128)}', space=vmem, size = 0x12000, scoped, tag = 'internal scratch']
  %s0 = inlined_call_operand.hbm [shape: f32[16,128], index: 0, kind: input, shape index: {}]
  %s1 = inlined_call_operand.hbm [shape: f32[128,128], index: 1, kind: input, shape index: {}]
  %s2 = inlined_call_operand.vmem [shape: f32[1,128], index: 2, kind: input, shape index: {}]
  %s3 = inlined_call_operand.hbm [shape: f32[128,128], index: 3, kind: input, shape index: {}]
  %s4 = inlined_call_operand.vmem [shape: f32[1,128], index: 4, kind: input, shape index: {}]
  %s5 = inlined_call_operand.hbm [shape: f32[16,128], index: 5, kind: output, shape index: {}]
  %s6 = sld [smem:[#allocation0]]
  $region46: #{tpu_custom_call.1} parent=0
    _
  %s8 = ssub.s32 1, %s6
  %s9 = scalar_select 0, %s8, %s6
  $region1: #{tpu_custom_call.1} parent=0
    #allocation2 [shape = 'u8[8192]{0}', space=vmem, size = 0x2000, scoped, tag = 'input window, operand 0, single buffered']
    #allocation3 [shape = 's32[1]{0}', space=sflag, size = 0x4, scoped, tag = 'scoped memory for tpu_custom_call.1']
    #allocation4 [shape = 's32[1]{0}', space=sflag, size = 0x4, scoped, tag = 'scoped memory for tpu_custom_call.1']
    #allocation5 [shape = 'u8[65536]{0}', space=vmem, size = 0x10000, scoped, tag = 'input window, operand 1, single buffered']
    #allocation6 [shape = 's32[1]{0}', space=sflag, size = 0x4, scoped, tag = 'scoped memory for tpu_custom_call.1']
    #allocation7 [shape = 'u8[65536]{0}', space=vmem, size = 0x10000, scoped, tag = 'input window, operand 3, single buffered']
    #allocation8 [shape = 'u8[8192]{0}', space=vmem, size = 0x2000, scoped, tag = 'output window, operand 0, single buffered']
    %10 = vsyncpa [#allocation3], 0
    %11 = vsyncpa [#allocation6], 0
    %12 = vsyncpa [#allocation4], 0
    // Predicated region
    $region2: #{tpu_custom_call.1} parent=1 // pred_check
      _
    $region3: #{tpu_custom_call.1} parent=1 // pred_check_branch
      %14 = sbr.rel (0) target = $region5
    $region4: #{tpu_custom_call.1} parent=1 // pred_region
      %s16 = ssub.s32 256, 256
      %17 = vsyncadd [#allocation3], %s16
      %s18 = sshll.u32 [#allocation2], 4
      %s19 = int_to_ptr.vmem [resolvable:$true] %s18
      %24 = dma.hbm_to_vmem [thread:$0]  %s0, 256, %s19, [#allocation3], 128, 128, 8
    $region5: #{tpu_custom_call.1} parent=1 // pred_fallthru
      _
    // Predicated region
    $region6: #{tpu_custom_call.1} parent=1 // pred_check
      _
    $region7: #{tpu_custom_call.1} parent=1 // pred_check_branch
      %26 = sbr.rel (0) target = $region9
    $region8: #{tpu_custom_call.1} parent=1 // pred_region
      %s28 = ssub.s32 2048, 2048
      %29 = vsyncadd [#allocation6], %s28
      %s30 = sshll.u32 [#allocation5], 4
      %s31 = int_to_ptr.vmem [resolvable:$true] %s30
      %36 = dma.hbm_to_vmem [thread:$0]  %s1, 2048, %s31, [#allocation6], 128, 128, 8
    $region9: #{tpu_custom_call.1} parent=1 // pred_fallthru
      _
    // Predicated region
    $region10: #{tpu_custom_call.1} parent=1 // pred_check
      _
    $region11: #{tpu_custom_call.1} parent=1 // pred_check_branch
      %38 = sbr.rel (0) target = $region13
    $region12: #{tpu_custom_call.1} parent=1 // pred_region
      _
    $region13: #{tpu_custom_call.1} parent=1 // pred_fallthru
      _
    // Predicated region
    $region14: #{tpu_custom_call.1} parent=1 // pred_check
      _
    $region15: #{tpu_custom_call.1} parent=1 // pred_check_branch
      %40 = sbr.rel (0) target = $region17
    $region16: #{tpu_custom_call.1} parent=1 // pred_region
      %s42 = ssub.s32 2048, 2048
      %43 = vsyncadd [#allocation6], %s42
      %s44 = sshll.u32 [#allocation7], 4
      %s45 = int_to_ptr.vmem [resolvable:$true] %s44
      %50 = dma.hbm_to_vmem [thread:$0]  %s3, 2048, %s45, [#allocation6], 128, 128, 8
    $region17: #{tpu_custom_call.1} parent=1 // pred_fallthru
      _
    // Predicated region
    $region18: #{tpu_custom_call.1} parent=1 // pred_check
      _
    $region19: #{tpu_custom_call.1} parent=1 // pred_check_branch
      %52 = sbr.rel (0) target = $region21
    $region20: #{tpu_custom_call.1} parent=1 // pred_region
      _
    $region21: #{tpu_custom_call.1} parent=1 // pred_fallthru
      _
    // Predicated region
    $region22: #{tpu_custom_call.1} parent=1 // pred_check
      _
    $region23: #{tpu_custom_call.1} parent=1 // pred_check_branch
      %54 = sbr.rel (0) target = $region25
    $region24: #{tpu_custom_call.1} parent=1 // pred_region
      %55 = dma.done [#allocation3], 256
    $region25: #{tpu_custom_call.1} parent=1 // pred_fallthru
      _
    // Predicated region
    $region26: #{tpu_custom_call.1} parent=1 // pred_check
      _
    $region27: #{tpu_custom_call.1} parent=1 // pred_check_branch
      %57 = sbr.rel (0) target = $region29
    $region28: #{tpu_custom_call.1} parent=1 // pred_region
      %58 = dma.done [#allocation6], 2048
    $region29: #{tpu_custom_call.1} parent=1 // pred_fallthru
      _
    // Predicated region
    $region30: #{tpu_custom_call.1} parent=1 // pred_check
      _
    $region31: #{tpu_custom_call.1} parent=1 // pred_check_branch
      %60 = sbr.rel (0) target = $region33
    $region32: #{tpu_custom_call.1} parent=1 // pred_region
      %61 = dma.done [#allocation6], 2048
    $region33: #{tpu_custom_call.1} parent=1 // pred_fallthru
      _
    %p62 = scmp.eq.s32.totalorder 0, 0
    // Predicated region
    $region34: #{tpu_custom_call.1} parent=1 // pred_check
      %p63 = pneg %p62
    $region35: #{tpu_custom_call.1} parent=1 // pred_check_branch
      %65 = sbr.rel (%p63) target = $region37
    $region36: #{tpu_custom_call.1} parent=1 // pred_region
      %v66 = vld [vmem:[%s4] sm:$0x1]
      %v68 = vlaneseq
      %v69 = vshrl.u32 %v68, 7
      %v70 = vsub.s32 0, %v69
      %v71 = vrot.slane %v66, %v70
      %73 = vst [vmem:[#allocation8] sm:$0xff] %v71
      %74 = vst [vmem:[#allocation8 + $0x8] sm:$0xff] %v71
    $region37: #{tpu_custom_call.1} parent=1 // pred_fallthru
      _
    %v75 = vld [vmem:[#allocation2] sm:$0xff]
    %v76 = vld [vmem:[#allocation2 + $0x8] sm:$0xff]
    %v77 = vld [vmem:[#allocation5] sm:$0xff]
    %v78 = vld [vmem:[#allocation5 + $0x8] sm:$0xff]
    %v79 = vld [vmem:[#allocation5 + $0x10] sm:$0xff]
    %v80 = vld [vmem:[#allocation5 + $0x18] sm:$0xff]
    %v81 = vld [vmem:[#allocation5 + $0x20] sm:$0xff]
    %v82 = vld [vmem:[#allocation5 + $0x28] sm:$0xff]
    %v83 = vld [vmem:[#allocation5 + $0x30] sm:$0xff]
    %v84 = vld [vmem:[#allocation5 + $0x38] sm:$0xff]
    %v85 = vld [vmem:[#allocation5 + $0x40] sm:$0xff]
    %v86 = vld [vmem:[#allocation5 + $0x48] sm:$0xff]
    %v87 = vld [vmem:[#allocation5 + $0x50] sm:$0xff]
    %v88 = vld [vmem:[#allocation5 + $0x58] sm:$0xff]
    %v89 = vld [vmem:[#allocation5 + $0x60] sm:$0xff]
    %v90 = vld [vmem:[#allocation5 + $0x68] sm:$0xff]
    %v91 = vld [vmem:[#allocation5 + $0x70] sm:$0xff]
    %v92 = vld [vmem:[#allocation5 + $0x78] sm:$0xff]
    %v93 = vld [vmem:[%s2] sm:$0x1]
    %v95 = vlaneseq
    %v96 = vshrl.u32 %v95, 7
    %v97 = vsub.s32 0, %v96
    %v98 = vrot.slane %v93, %v97
    %100 = vmatprep.subr.mxu0 0.0
    %101 = vmatpush1.msra.mxu0 %v92
    %102 = vmatprep.subr.mxu0 0.0
    %103 = vmatpush1.msra.mxu0 %v91
    %104 = vmatprep.subr.mxu0 0.0
    %105 = vmatpush1.msra.mxu0 %v90
    %106 = vmatprep.subr.mxu0 0.0
    %107 = vmatpush1.msra.mxu0 %v89
    %108 = vmatprep.subr.mxu0 0.0
    %109 = vmatpush1.msra.mxu0 %v88
    %110 = vmatprep.subr.mxu0 0.0
    %111 = vmatpush1.msra.mxu0 %v87
    %112 = vmatprep.subr.mxu0 0.0
    %113 = vmatpush1.msra.mxu0 %v86
    %114 = vmatprep.subr.mxu0 0.0
    %115 = vmatpush1.msra.mxu0 %v85
    %116 = vmatprep.subr.mxu0 0.0
    %117 = vmatpush1.msra.mxu0 %v84
    %118 = vmatprep.subr.mxu0 0.0
    %119 = vmatpush1.msra.mxu0 %v83
    %120 = vmatprep.subr.mxu0 0.0
    %121 = vmatpush1.msra.mxu0 %v82
    %122 = vmatprep.subr.mxu0 0.0
    %123 = vmatpush1.msra.mxu0 %v81
    %124 = vmatprep.subr.mxu0 0.0
    %125 = vmatpush1.msra.mxu0 %v80
    %126 = vmatprep.subr.mxu0 0.0
    %127 = vmatpush1.msra.mxu0 %v79
    %128 = vmatprep.subr.mxu0 0.0
    %129 = vmatpush1.msra.mxu0 %v78
    %130 = vmatprep.subr.mxu0 0.0
    %131 = vmatpush1.msra.mxu0 %v77
    %132 = vmatprep.subr.mxu0 0.0
    %133 = vmatpush2.msra.mxu0 0.0
    %134 = vmatprep.subr.mxu0 0.0
    %135 = vmatpush2.msra.mxu0 0.0
    %136 = vmatprep.subr.mxu0 0.0
    %137 = vmatpush2.msra.mxu0 0.0
    %138 = vmatprep.subr.mxu0 0.0
    %139 = vmatpush2.msra.mxu0 0.0
    %140 = vmatprep.subr.mxu0 0.0
    %141 = vmatpush2.msra.mxu0 0.0
    %142 = vmatprep.subr.mxu0 0.0
    %143 = vmatpush2.msra.mxu0 0.0
    %144 = vmatprep.subr.mxu0 0.0
    %145 = vmatpush2.msra.mxu0 0.0
    %146 = vmatprep.subr.mxu0 0.0
    %147 = vmatpush2.msra.mxu0 0.0
    %148 = vmatprep.subr.mxu0 0.0
    %149 = vmatpush2.msra.mxu0 0.0
    %150 = vmatprep.subr.mxu0 0.0
    %151 = vmatpush2.msra.mxu0 0.0
    %152 = vmatprep.subr.mxu0 0.0
    %153 = vmatpush2.msra.mxu0 0.0
    %154 = vmatprep.subr.mxu0 0.0
    %155 = vmatpush2.msra.mxu0 0.0
    %156 = vmatprep.subr.mxu0 0.0
    %157 = vmatpush2.msra.mxu0 0.0
    %158 = vmatprep.subr.mxu0 0.0
    %159 = vmatpush2.msra.mxu0 0.0
    %160 = vmatprep.subr.mxu0 0.0
    %161 = vmatpush2.msra.mxu0 0.0
    %162 = vmatprep.subr.mxu0 0.0
    %163 = vmatpush2.msra.mxu0 0.0
    %164 = vmatprep.mubr.f32.mxu0 0.0
    %165 = vmatmul.mubr.f32.gmra.mxu0 %v75
    %v166 = vpop.f32.mrf.mxu0
    %v167 = vadd.f32 %v98, %v166
    %v168 = vpop.f32.mrf.mxu0
    %169 = vmatprep.mubr.f32.mxu0 0.0
    %170 = vmatmul.mubr.f32.gmra.mxu0 %v76
    %v171 = vpop.f32.mrf.mxu0
    %v172 = vadd.f32 %v98, %v171
    %v173 = vpop.f32.mrf.mxu0
    %174 = vdwg.mxu0
    %v175 = vmul.f32 %v167, 0.5
    %v176 = vmul.f32 %v172, 0.5
    %v177 = vmul.f32 %v167, 0.70710677
    %v178 = vmul.f32 %v172, 0.70710677
    %v179 = verf.f32.pop %v177
    %v180 = verf.f32.pop %v178
    %v181 = vadd.f32 %v179, 1.0
    %v182 = vadd.f32 %v180, 1.0
    %v183 = vmul.f32 %v175, %v181
    %v184 = vmul.f32 %v176, %v182
    %v185 = vld [vmem:[#allocation8] sm:$0xff]
    %v186 = vld [vmem:[#allocation8 + $0x8] sm:$0xff]
    %v187 = vld [vmem:[#allocation7] sm:$0xff]
    %v188 = vld [vmem:[#allocation7 + $0x8] sm:$0xff]
    %v189 = vld [vmem:[#allocation7 + $0x10] sm:$0xff]
    %v190 = vld [vmem:[#allocation7 + $0x18] sm:$0xff]
    %v191 = vld [vmem:[#allocation7 + $0x20] sm:$0xff]
    %v192 = vld [vmem:[#allocation7 + $0x28] sm:$0xff]
    %v193 = vld [vmem:[#allocation7 + $0x30] sm:$0xff]
    %v194 = vld [vmem:[#allocation7 + $0x38] sm:$0xff]
    %v195 = vld [vmem:[#allocation7 + $0x40] sm:$0xff]
    %v196 = vld [vmem:[#allocation7 + $0x48] sm:$0xff]
    %v197 = vld [vmem:[#allocation7 + $0x50] sm:$0xff]
    %v198 = vld [vmem:[#allocation7 + $0x58] sm:$0xff]
    %v199 = vld [vmem:[#allocation7 + $0x60] sm:$0xff]
    %v200 = vld [vmem:[#allocation7 + $0x68] sm:$0xff]
    %v201 = vld [vmem:[#allocation7 + $0x70] sm:$0xff]
    %v202 = vld [vmem:[#allocation7 + $0x78] sm:$0xff]
    %203 = vmatprep.subr.mxu0 0.0
    %204 = vmatpush1.msra.mxu0 %v202
    %205 = vmatprep.subr.mxu0 0.0
    %206 = vmatpush1.msra.mxu0 %v201
    %207 = vmatprep.subr.mxu0 0.0
    %208 = vmatpush1.msra.mxu0 %v200
    %209 = vmatprep.subr.mxu0 0.0
    %210 = vmatpush1.msra.mxu0 %v199
    %211 = vmatprep.subr.mxu0 0.0
    %212 = vmatpush1.msra.mxu0 %v198
    %213 = vmatprep.subr.mxu0 0.0
    %214 = vmatpush1.msra.mxu0 %v197
    %215 = vmatprep.subr.mxu0 0.0
    %216 = vmatpush1.msra.mxu0 %v196
    %217 = vmatprep.subr.mxu0 0.0
    %218 = vmatpush1.msra.mxu0 %v195
    %219 = vmatprep.subr.mxu0 0.0
    %220 = vmatpush1.msra.mxu0 %v194
    %221 = vmatprep.subr.mxu0 0.0
    %222 = vmatpush1.msra.mxu0 %v193
    %223 = vmatprep.subr.mxu0 0.0
    %224 = vmatpush1.msra.mxu0 %v192
    %225 = vmatprep.subr.mxu0 0.0
    %226 = vmatpush1.msra.mxu0 %v191
    %227 = vmatprep.subr.mxu0 0.0
    %228 = vmatpush1.msra.mxu0 %v190
    %229 = vmatprep.subr.mxu0 0.0
    %230 = vmatpush1.msra.mxu0 %v189
    %231 = vmatprep.subr.mxu0 0.0
    %232 = vmatpush1.msra.mxu0 %v188
    %233 = vmatprep.subr.mxu0 0.0
    %234 = vmatpush1.msra.mxu0 %v187
    %235 = vmatprep.subr.mxu0 0.0
    %236 = vmatpush2.msra.mxu0 0.0
    %237 = vmatprep.subr.mxu0 0.0
    %238 = vmatpush2.msra.mxu0 0.0
    %239 = vmatprep.subr.mxu0 0.0
    %240 = vmatpush2.msra.mxu0 0.0
    %241 = vmatprep.subr.mxu0 0.0
    %242 = vmatpush2.msra.mxu0 0.0
    %243 = vmatprep.subr.mxu0 0.0
    %244 = vmatpush2.msra.mxu0 0.0
    %245 = vmatprep.subr.mxu0 0.0
    %246 = vmatpush2.msra.mxu0 0.0
    %247 = vmatprep.subr.mxu0 0.0
    %248 = vmatpush2.msra.mxu0 0.0
    %249 = vmatprep.subr.mxu0 0.0
    %250 = vmatpush2.msra.mxu0 0.0
    %251 = vmatprep.subr.mxu0 0.0
    %252 = vmatpush2.msra.mxu0 0.0
    %253 = vmatprep.subr.mxu0 0.0
    %254 = vmatpush2.msra.mxu0 0.0
    %255 = vmatprep.subr.mxu0 0.0
    %256 = vmatpush2.msra.mxu0 0.0
    %257 = vmatprep.subr.mxu0 0.0
    %258 = vmatpush2.msra.mxu0 0.0
    %259 = vmatprep.subr.mxu0 0.0
    %260 = vmatpush2.msra.mxu0 0.0
    %261 = vmatprep.subr.mxu0 0.0
    %262 = vmatpush2.msra.mxu0 0.0
    %263 = vmatprep.subr.mxu0 0.0
    %264 = vmatpush2.msra.mxu0 0.0
    %265 = vmatprep.subr.mxu0 0.0
    %266 = vmatpush2.msra.mxu0 0.0
    %267 = vmatprep.mubr.f32.mxu0 0.0
    %268 = vmatmul.mubr.f32.gmra.mxu0 %v183
    %v269 = vpop.f32.mrf.mxu0
    %v270 = vadd.f32 0.0, %v269
    %v271 = vpop.f32.mrf.mxu0
    %272 = vmatprep.mubr.f32.mxu0 0.0
    %273 = vmatmul.mubr.f32.gmra.mxu0 %v184
    %v274 = vpop.f32.mrf.mxu0
    %v275 = vadd.f32 0.0, %v274
    %v276 = vpop.f32.mrf.mxu0
    %277 = vdwg.mxu0
    %v278 = vadd.f32 %v185, %v270
    %v279 = vadd.f32 %v186, %v275
    %280 = vst [vmem:[#allocation8] sm:$0xff] %v278
    %281 = vst [vmem:[#allocation8 + $0x8] sm:$0xff] %v279
    // Predicated region
    $region38: #{tpu_custom_call.1} parent=1 // pred_check
      _
    $region39: #{tpu_custom_call.1} parent=1 // pred_check_branch
      %283 = sbr.rel (0) target = $region41
    $region40: #{tpu_custom_call.1} parent=1 // pred_region
      %s285 = ssub.s32 256, 256
      %286 = vsyncadd [#allocation4], %s285
      %s287 = sshll.u32 [#allocation8], 4
      %s288 = int_to_ptr.vmem [resolvable:$true] %s287
      %293 = dma.vmem_to_hbm [thread:$0]  %s288, 256, %s5, [#allocation4], 128, 128, 8
    $region41: #{tpu_custom_call.1} parent=1 // pred_fallthru
      _
    // Predicated region
    $region42: #{tpu_custom_call.1} parent=1 // pred_check
      _
    $region43: #{tpu_custom_call.1} parent=1 // pred_check_branch
      %295 = sbr.rel (0) target = $region45
    $region44: #{tpu_custom_call.1} parent=1 // pred_region
      %296 = dma.done [#allocation4], 256
    $region45: #{tpu_custom_call.1} parent=1 // pred_fallthru
      _
    %297 = vsyncpa [#allocation3], 1
    %298 = vsyncpa [#allocation6], 1
    %299 = vsyncpa [#allocation4], 1

</llo_original>
